<compile_context>
chip_gen: v6e
topology: v6e:2x2x1
jax: 0.10.0
libtpu: 0.0.40
codegen_flags: <defaults>
</compile_context>

<pallas_src>
import jax
import jax.numpy as jnp
from jax.experimental import pallas as pl
from jax.experimental.pallas import tpu as pltpu


HIDDEN = 128
IN_FEATURES = 3


def ac_kernel(xt_ref, w1_ref, b1_ref, w2_ref, b2_ref, w3t_ref, b3_ref, o_ref):
    """One batch tile of the fused MLP (feature-major, batch on lanes).

    xt_ref  : (3, TB)     input, batch on lanes (matmul dtype)
    w1_ref  : (128, 3)    fc1 weight (torch out x in layout, matmul dtype)
    b1_ref  : (128, 1)    f32
    w2_ref  : (128, 128)  fc2 weight (matmul dtype)
    b2_ref  : (128, 1)    f32
    w3t_ref : (8, 128)    fc3 weight transposed; row 0 valid, rows 1..7 zero
    b3_ref  : (1,)        f32 scalar in SMEM
    o_ref   : (1, TB)     f32 output, batch on lanes (lane-dense store)
    """
    # ---- layer 1: (128,3) @ (3,TB) on the MXU (K=3 padded internally) ----
    h1 = jnp.dot(w1_ref[...], xt_ref[...], preferred_element_type=jnp.float32)
    h1 = jnp.maximum(h1 + b1_ref[...], 0.0)                      # f32 VPU

    # ---- layer 2: (128,128) @ (128,TB) on the MXU, f32 accumulation -------
    h2 = jnp.dot(w2_ref[...], h1.astype(w2_ref.dtype),
                 preferred_element_type=jnp.float32)             # (128, TB)
    h2 = jnp.maximum(h2 + b2_ref[...], 0.0)                      # f32 VPU

    # ---- layer 3: (8,128) @ (128,TB) on the MXU; row 0 is the real output -
    h3 = jnp.dot(w3t_ref[...], h2.astype(w3t_ref.dtype),
                 preferred_element_type=jnp.float32)[0:1, :]     # (1, TB)

    # ---- head: tanh * 2 (EUP), lane-dense store ---------------------------
    o_ref[...] = jnp.tanh(h3 + b3_ref[0]) * 2.0


def ac_forward(x, params, *, matmul_dtype=jnp.bfloat16, tile_lanes=2048):
    """x: (B, 3) float32 -> (B, 1) float32.

    Default matmul_dtype=bfloat16 runs all matmuls on the native bf16 MXU
    path (f32 accumulation); elementwise bias/relu/tanh stay f32.
    matmul_dtype=float32 gives the exact (multi-pass MXU) path.
    """
    w1, b1, w2, b2, w3, b3 = (params["w1"], params["b1"], params["w2"],
                              params["b2"], params["w3"], params["b3"])
    B = x.shape[0]

    # Batch tile on lanes: multiple of 128; covers the whole padded batch
    # (single grid step) whenever B <= tile_lanes.
    TB = min(tile_lanes, pl.cdiv(B, 128) * 128)
    B_pad = pl.cdiv(B, TB) * TB
    num_tiles = B_pad // TB

    # Feature-major, matmul-dtype input: one fused transpose+cast(+pad) op
    # (no zeros() + scatter pre-pass).  Padded tail columns are zeros and the
    # corresponding outputs are sliced off below.
    xt = x.T.astype(matmul_dtype)                       # (3, B)
    if B_pad > B:
        xt = jnp.pad(xt, ((0, 0), (0, B_pad - B)))      # (3, B_pad)

    # Cast weights once in the wrapper (not per grid step in the kernel).
    # In a real training loop these would be cached/pre-cast alongside params.
    w1c = w1.astype(matmul_dtype)                                   # (128, 3)
    w2c = w2.astype(matmul_dtype)                                   # (128,128)
    w3t = jnp.pad(w3.T.astype(matmul_dtype), ((0, 7), (0, 0)))      # (8, 128)

    # Weights/biases: full blocks with constant index maps -> VMEM-resident
    # across all grid iterations (no re-fetch).
    def resident(a):
        return pl.BlockSpec(a.shape, lambda i: (0,) * a.ndim)

    cost = pl.CostEstimate(
        flops=2 * B_pad * (IN_FEATURES * HIDDEN + HIDDEN * HIDDEN + HIDDEN),
        transcendentals=B_pad,
        bytes_accessed=(xt.nbytes + w1c.nbytes + b1.nbytes + w2c.nbytes
                        + b2.nbytes + w3t.nbytes + b3.nbytes + 4 * B_pad),
    )

    out = pl.pallas_call(
        ac_kernel,
        out_shape=jax.ShapeDtypeStruct((1, B_pad), jnp.float32),
        grid=(num_tiles,),
        in_specs=[
            pl.BlockSpec((IN_FEATURES, TB), lambda i: (0, i)),   # x tile (pipelined)
            resident(w1c), resident(b1),
            resident(w2c), resident(b2),
            resident(w3t),
            pl.BlockSpec(memory_space=pltpu.MemorySpace.SMEM),   # b3 scalar
        ],
        out_specs=pl.BlockSpec((1, TB), lambda i: (0, i)),
        compiler_params=pltpu.CompilerParams(
            dimension_semantics=("parallel",),
            vmem_limit_bytes=32 * 1024 * 1024),
        cost_estimate=cost,
    )(xt, w1c, b1, w2c, b2, w3t, b3)                             # (1, B_pad)

    return out[0, :B][:, None]                                   # (B, 1)


def init_params(key):
    """Xavier-uniform weights (as in nn.init.xavier_uniform_) and
    PyTorch-default uniform biases, in kernel-friendly layouts (f32)."""
    def xavier(key, shape, fan_in, fan_out):
        bound = float(jnp.sqrt(6.0 / (fan_in + fan_out)))
        return jax.random.uniform(key, shape, jnp.float32, -bound, bound)

    def bias(key, shape, fan_in):
        bound = 1.0 / float(jnp.sqrt(fan_in))
        return jax.random.uniform(key, shape, jnp.float32, -bound, bound)

    k = jax.random.split(key, 6)
    return {
        # torch layout (out, in) for w1/w2; w3 stored transposed as (128, 1)
        "w1": xavier(k[0], (HIDDEN, IN_FEATURES), IN_FEATURES, HIDDEN),
        "b1": bias(k[1], (HIDDEN, 1), IN_FEATURES),
        "w2": xavier(k[2], (HIDDEN, HIDDEN), HIDDEN, HIDDEN),
        "b2": bias(k[3], (HIDDEN, 1), HIDDEN),
        "w3": xavier(k[4], (HIDDEN, 1), HIDDEN, 1),
        "b3": bias(k[5], (1,), HIDDEN),
    }


def reference_forward(x, p):
    h1 = jnp.maximum(x @ p["w1"].T + p["b1"].T, 0.0)
    h2 = jnp.maximum(h1 @ p["w2"].T + p["b2"].T, 0.0)
    return jnp.tanh(h2 @ p["w3"] + p["b3"]) * 2.0


if __name__ == "__main__":
    key = jax.random.PRNGKey(0)
    k_param, k_x = jax.random.split(key)

    params = init_params(k_param)

    # Pendulum-v1 observation is 3-dim; small batch of 8.
    x = jax.random.normal(k_x, (8, 3), jnp.float32)
    ref = reference_forward(x, params)

    # Default path: bf16 MXU matmuls, f32 elementwise.
    out = jax.block_until_ready(ac_forward(x, params))
    assert out.shape == (8, 1)
    assert jnp.allclose(out, ref, atol=3e-2, rtol=3e-2), "bf16 path mismatch"

    # Exact f32 path (multi-pass MXU emulation).
    out_f32 = jax.block_until_ready(
        ac_forward(x, params, matmul_dtype=jnp.float32))
    assert jnp.allclose(out_f32, ref, atol=1e-3, rtol=1e-3), "f32 path mismatch"

    # Multi-tile batch (small tile_lanes to force >1 grid step) exercises the
    # grid / pipelining / padding path.
    xb = jax.random.normal(k_x, (1000, 3), jnp.float32)
    outb = jax.block_until_ready(ac_forward(xb, params, tile_lanes=256))
    assert outb.shape == (1000, 1)
    assert jnp.allclose(outb, reference_forward(xb, params),
                        atol=3e-2, rtol=3e-2), "batched path mismatch"

    print("KERNEL_OK")
</pallas_src>

<mosaic_0001>
module attributes {stable_mosaic.version = 11 : i64} {
  func.func @ac_kernel(%arg0: i32, %arg1: memref<3x128xbf16, #tpu.memory_space<vmem>>, %arg2: memref<128x3xbf16, #tpu.memory_space<vmem>>, %arg3: memref<128x1xf32, #tpu.memory_space<vmem>>, %arg4: memref<128x128xbf16, #tpu.memory_space<vmem>>, %arg5: memref<128x1xf32, #tpu.memory_space<vmem>>, %arg6: memref<8x128xbf16, #tpu.memory_space<vmem>>, %arg7: memref<1xf32, #tpu.memory_space<smem>>, %arg8: memref<1x128xf32, #tpu.memory_space<vmem>>) attributes {dimension_semantics = [#tpu.dimension_semantics<parallel>], iteration_bounds = array<i64: 1>, scalar_prefetch = 0 : i64, scratch_operands = 0 : i64, tpu.core_type = #tpu.core_type<tc>, window_params = [{transform_indices = @transform_0, window_bounds = array<i64: 3, 128>}, {pipeline_mode = #tpu.pipeline_mode<synchronous>, transform_indices = @transform_1, window_bounds = array<i64: 128, 3>}, {pipeline_mode = #tpu.pipeline_mode<synchronous>, transform_indices = @transform_2, window_bounds = array<i64: 128, 1>}, {pipeline_mode = #tpu.pipeline_mode<synchronous>, transform_indices = @transform_3, window_bounds = array<i64: 128, 128>}, {pipeline_mode = #tpu.pipeline_mode<synchronous>, transform_indices = @transform_4, window_bounds = array<i64: 128, 1>}, {pipeline_mode = #tpu.pipeline_mode<synchronous>, transform_indices = @transform_5, window_bounds = array<i64: 8, 128>}, {transform_indices = @transform_6, window_bounds = array<i64: 1>}, {transform_indices = @transform_7, window_bounds = array<i64: 1, 128>}]} {
    %c0 = arith.constant 0 : index
    %c0_0 = arith.constant 0 : index
    %0 = vector.load %arg2[%c0, %c0_0] : memref<128x3xbf16, #tpu.memory_space<vmem>>, vector<128x3xbf16>
    %c0_1 = arith.constant 0 : index
    %c0_2 = arith.constant 0 : index
    %1 = vector.load %arg1[%c0_1, %c0_2] : memref<3x128xbf16, #tpu.memory_space<vmem>>, vector<3x128xbf16>
    %cst = arith.constant dense<0.000000e+00> : vector<128x128xf32>
    %2 = tpu.matmul %0, %1, %cst {dimension_numbers = #tpu.dot_dimension_numbers<[1], [0], [0], [1], [0, 0, 1, 1], [], []>} : vector<128x3xbf16>, vector<3x128xbf16>, vector<128x128xf32> -> vector<128x128xf32>
    %c0_3 = arith.constant 0 : index
    %c0_4 = arith.constant 0 : index
    %3 = vector.load %arg3[%c0_3, %c0_4] : memref<128x1xf32, #tpu.memory_space<vmem>>, vector<128x1xf32>
    %4 = vector.broadcast %3 : vector<128x1xf32> to vector<128x128xf32>
    %5 = arith.addf %2, %4 : vector<128x128xf32>
    %cst_5 = arith.constant 0.000000e+00 : f32
    %6 = vector.broadcast %cst_5 : f32 to vector<128x128xf32>
    %7 = arith.maximumf %5, %6 : vector<128x128xf32>
    %c0_6 = arith.constant 0 : index
    %c0_7 = arith.constant 0 : index
    %8 = vector.load %arg4[%c0_6, %c0_7] : memref<128x128xbf16, #tpu.memory_space<vmem>>, vector<128x128xbf16>
    %9 = arith.truncf %7 : vector<128x128xf32> to vector<128x128xbf16>
    %cst_8 = arith.constant dense<0.000000e+00> : vector<128x128xf32>
    %10 = tpu.matmul %8, %9, %cst_8 {dimension_numbers = #tpu.dot_dimension_numbers<[1], [0], [0], [1], [0, 0, 1, 1], [], []>} : vector<128x128xbf16>, vector<128x128xbf16>, vector<128x128xf32> -> vector<128x128xf32>
    %c0_9 = arith.constant 0 : index
    %c0_10 = arith.constant 0 : index
    %11 = vector.load %arg5[%c0_9, %c0_10] : memref<128x1xf32, #tpu.memory_space<vmem>>, vector<128x1xf32>
    %12 = vector.broadcast %11 : vector<128x1xf32> to vector<128x128xf32>
    %13 = arith.addf %10, %12 : vector<128x128xf32>
    %cst_11 = arith.constant 0.000000e+00 : f32
    %14 = vector.broadcast %cst_11 : f32 to vector<128x128xf32>
    %15 = arith.maximumf %13, %14 : vector<128x128xf32>
    %c0_12 = arith.constant 0 : index
    %c0_13 = arith.constant 0 : index
    %16 = vector.load %arg6[%c0_12, %c0_13] : memref<8x128xbf16, #tpu.memory_space<vmem>>, vector<8x128xbf16>
    %17 = arith.truncf %15 : vector<128x128xf32> to vector<128x128xbf16>
    %cst_14 = arith.constant dense<0.000000e+00> : vector<8x128xf32>
    %18 = tpu.matmul %16, %17, %cst_14 {dimension_numbers = #tpu.dot_dimension_numbers<[1], [0], [0], [1], [0, 0, 1, 1], [], []>} : vector<8x128xbf16>, vector<128x128xbf16>, vector<8x128xf32> -> vector<8x128xf32>
    %19 = vector.extract_strided_slice %18 {offsets = [0, 0], sizes = [1, 128], strides = [1, 1]} : vector<8x128xf32> to vector<1x128xf32>
    %c0_15 = arith.constant 0 : index
    %20 = memref.load %arg7[%c0_15] : memref<1xf32, #tpu.memory_space<smem>>
    %21 = vector.broadcast %20 : f32 to vector<1x128xf32>
    %22 = arith.addf %19, %21 : vector<1x128xf32>
    %23 = math.tanh %22 : vector<1x128xf32>
    %cst_16 = arith.constant 2.000000e+00 : f32
    %24 = vector.broadcast %cst_16 : f32 to vector<1x128xf32>
    %25 = arith.mulf %23, %24 : vector<1x128xf32>
    %c0_17 = arith.constant 0 : index
    %c0_18 = arith.constant 0 : index
    %26 = vector.load %arg8[%c0_17, %c0_18] : memref<1x128xf32, #tpu.memory_space<vmem>>, vector<1x128xf32>
    tpu.vector_store %arg8[%c0_17, %c0_18], %25 {strides = array<i32>} : memref<1x128xf32, #tpu.memory_space<vmem>>, vector<1x128xf32>,
    return
  }
  func.func @transform_0(%arg0: i32) -> (i32, i32) {
    %c0_i32 = arith.constant 0 : i32
    %c0_i32_0 = arith.constant 0 : i32
    return %c0_i32, %arg0 : i32, i32
  }
  func.func @transform_1(%arg0: i32) -> (i32, i32) {
    %c0_i32 = arith.constant 0 : i32
    %c0_i32_0 = arith.constant 0 : i32
    %c0_i32_1 = arith.constant 0 : i32
    return %c0_i32, %c0_i32_0 : i32, i32
  }
  func.func @transform_2(%arg0: i32) -> (i32, i32) {
    %c0_i32 = arith.constant 0 : i32
    %c0_i32_0 = arith.constant 0 : i32
    %c0_i32_1 = arith.constant 0 : i32
    return %c0_i32, %c0_i32_0 : i32, i32
  }
  func.func @transform_3(%arg0: i32) -> (i32, i32) {
    %c0_i32 = arith.constant 0 : i32
    %c0_i32_0 = arith.constant 0 : i32
    %c0_i32_1 = arith.constant 0 : i32
    return %c0_i32, %c0_i32_0 : i32, i32
  }
  func.func @transform_4(%arg0: i32) -> (i32, i32) {
    %c0_i32 = arith.constant 0 : i32
    %c0_i32_0 = arith.constant 0 : i32
    %c0_i32_1 = arith.constant 0 : i32
    return %c0_i32, %c0_i32_0 : i32, i32
  }
  func.func @transform_5(%arg0: i32) -> (i32, i32) {
    %c0_i32 = arith.constant 0 : i32
    %c0_i32_0 = arith.constant 0 : i32
    %c0_i32_1 = arith.constant 0 : i32
    return %c0_i32, %c0_i32_0 : i32, i32
  }
  func.func @transform_6(%arg0: i32) -> i32 {
    %c0_i32 = arith.constant 0 : i32
    %c0_i32_0 = arith.constant 0 : i32
    return %c0_i32 : i32
  }
  func.func @transform_7(%arg0: i32) -> (i32, i32) {
    %c0_i32 = arith.constant 0 : i32
    %c0_i32_0 = arith.constant 0 : i32
    return %c0_i32, %arg0 : i32, i32
  }
}

</mosaic_0001>

<llo_original>
// kernel: tpu_custom_call.1
$region0: #{tpu_custom_call.1}
  #allocation0 [shape = 'u32[]', space=smem, size = 0x4, offset = 0x4, fixed_abs, tag = 'smem constant byte address 0x4 - core index']
  #allocation1 [shape = 'u32[144,128]{1,0:T(1,128)}', space=vmem, size = 0x12000, scoped, tag = 'internal scratch']
  #allocation2 [shape = 'f32[1]{0:T(128)S(6)}', space=smem, size = 0x200, scoped, tag = 'scoped memory for tpu_custom_call.1']
  %s0 = inlined_call_operand.vmem [shape: bf16[3,128], index: 0, kind: input, shape index: {}]
  %s1 = inlined_call_operand.vmem [shape: bf16[128,3], index: 1, kind: input, shape index: {}]
  %s2 = inlined_call_operand.vmem [shape: f32[128,1], index: 2, kind: input, shape index: {}]
  %s3 = inlined_call_operand.vmem [shape: bf16[128,128], index: 3, kind: input, shape index: {}]
  %s4 = inlined_call_operand.vmem [shape: f32[128,1], index: 4, kind: input, shape index: {}]
  %s5 = inlined_call_operand.vmem [shape: bf16[8,128], index: 5, kind: input, shape index: {}]
  %s6 = inlined_call_operand.<no memory space> [shape: f32[1], index: 6, kind: input, shape index: {}]
  %s7 = inlined_call_operand.hbm [shape: f32[1,128], index: 7, kind: output, shape index: {}]
  %s8 = sld [smem:[#allocation0]]
  $region38: #{tpu_custom_call.1} parent=0
    _
  %s10 = ssub.s32 1, %s8
  %s11 = scalar_select 0, %s10, %s8
  %12 = sst [smem:[#allocation2]] %s6
  $region1: #{tpu_custom_call.1} parent=0
    #allocation3 [shape = 'u8[512]{0}', space=vmem, size = 0x400, scoped, tag = 'output window, operand 0, single buffered']
    #allocation4 [shape = 's32[1]{0}', space=sflag, size = 0x4, scoped, tag = 'scoped memory for tpu_custom_call.1']
    %13 = vsyncpa [#allocation4], 0
    // Predicated region
    $region2: #{tpu_custom_call.1} parent=1 // pred_check
      _
    $region3: #{tpu_custom_call.1} parent=1 // pred_check_branch
      %15 = sbr.rel (0) target = $region5
    $region4: #{tpu_custom_call.1} parent=1 // pred_region
      _
    $region5: #{tpu_custom_call.1} parent=1 // pred_fallthru
      _
    // Predicated region
    $region6: #{tpu_custom_call.1} parent=1 // pred_check
      _
    $region7: #{tpu_custom_call.1} parent=1 // pred_check_branch
      %17 = sbr.rel (0) target = $region9
    $region8: #{tpu_custom_call.1} parent=1 // pred_region
      _
    $region9: #{tpu_custom_call.1} parent=1 // pred_fallthru
      _
    // Predicated region
    $region10: #{tpu_custom_call.1} parent=1 // pred_check
      _
    $region11: #{tpu_custom_call.1} parent=1 // pred_check_branch
      %19 = sbr.rel (0) target = $region13
    $region12: #{tpu_custom_call.1} parent=1 // pred_region
      _
    $region13: #{tpu_custom_call.1} parent=1 // pred_fallthru
      _
    // Predicated region
    $region14: #{tpu_custom_call.1} parent=1 // pred_check
      _
    $region15: #{tpu_custom_call.1} parent=1 // pred_check_branch
      %21 = sbr.rel (0) target = $region17
    $region16: #{tpu_custom_call.1} parent=1 // pred_region
      _
    $region17: #{tpu_custom_call.1} parent=1 // pred_fallthru
      _
    // Predicated region
    $region18: #{tpu_custom_call.1} parent=1 // pred_check
      _
    $region19: #{tpu_custom_call.1} parent=1 // pred_check_branch
      %23 = sbr.rel (0) target = $region21
    $region20: #{tpu_custom_call.1} parent=1 // pred_region
      _
    $region21: #{tpu_custom_call.1} parent=1 // pred_fallthru
      _
    // Predicated region
    $region22: #{tpu_custom_call.1} parent=1 // pred_check
      _
    $region23: #{tpu_custom_call.1} parent=1 // pred_check_branch
      %25 = sbr.rel (0) target = $region25
    $region24: #{tpu_custom_call.1} parent=1 // pred_region
      _
    $region25: #{tpu_custom_call.1} parent=1 // pred_fallthru
      _
    // Predicated region
    $region26: #{tpu_custom_call.1} parent=1 // pred_check
      _
    $region27: #{tpu_custom_call.1} parent=1 // pred_check_branch
      %27 = sbr.rel (0) target = $region29
    $region28: #{tpu_custom_call.1} parent=1 // pred_region
      _
    $region29: #{tpu_custom_call.1} parent=1 // pred_fallthru
      _
    %v29 = vld [vmem:[%s1] sm:$0xf]
    %v30 = vld [vmem:[%s1 + $0x4] sm:$0xf]
    %v31 = vld [vmem:[%s1 + $0x8] sm:$0xf]
    %v32 = vld [vmem:[%s1 + $0xc] sm:$0xf]
    %v33 = vld [vmem:[%s1 + $0x10] sm:$0xf]
    %v34 = vld [vmem:[%s1 + $0x14] sm:$0xf]
    %v35 = vld [vmem:[%s1 + $0x18] sm:$0xf]
    %v36 = vld [vmem:[%s1 + $0x1c] sm:$0xf]
    %v37 = vld [vmem:[%s1 + $0x20] sm:$0xf]
    %v38 = vld [vmem:[%s1 + $0x24] sm:$0xf]
    %v39 = vld [vmem:[%s1 + $0x28] sm:$0xf]
    %v40 = vld [vmem:[%s1 + $0x2c] sm:$0xf]
    %v41 = vld [vmem:[%s1 + $0x30] sm:$0xf]
    %v42 = vld [vmem:[%s1 + $0x34] sm:$0xf]
    %v43 = vld [vmem:[%s1 + $0x38] sm:$0xf]
    %v44 = vld [vmem:[%s1 + $0x3c] sm:$0xf]
    %v45 = vld [vmem:[%s0] sm:$0x3]
    %v46 = vld [vmem:[%s2] sm:$0xff]
    %v47 = vld [vmem:[%s2 + $0x8] sm:$0xff]
    %v48 = vld [vmem:[%s2 + $0x10] sm:$0xff]
    %v49 = vld [vmem:[%s2 + $0x18] sm:$0xff]
    %v50 = vld [vmem:[%s2 + $0x20] sm:$0xff]
    %v51 = vld [vmem:[%s2 + $0x28] sm:$0xff]
    %v52 = vld [vmem:[%s2 + $0x30] sm:$0xff]
    %v53 = vld [vmem:[%s2 + $0x38] sm:$0xff]
    %v54 = vld [vmem:[%s2 + $0x40] sm:$0xff]
    %v55 = vld [vmem:[%s2 + $0x48] sm:$0xff]
    %v56 = vld [vmem:[%s2 + $0x50] sm:$0xff]
    %v57 = vld [vmem:[%s2 + $0x58] sm:$0xff]
    %v58 = vld [vmem:[%s2 + $0x60] sm:$0xff]
    %v59 = vld [vmem:[%s2 + $0x68] sm:$0xff]
    %v60 = vld [vmem:[%s2 + $0x70] sm:$0xff]
    %v61 = vld [vmem:[%s2 + $0x78] sm:$0xff]
    %63 = vset.pattern.permute.xlu0 0
    %64 = vperm.xlu0 %63, %v46
    %v65 = vpop.permute.xlu0 %64
    %68 = vset.pattern.permute.xlu0 0
    %69 = vperm.xlu0 %68, %v47
    %v70 = vpop.permute.xlu0 %69
    %73 = vset.pattern.permute.xlu0 0
    %74 = vperm.xlu0 %73, %v48
    %v75 = vpop.permute.xlu0 %74
    %78 = vset.pattern.permute.xlu0 0
    %79 = vperm.xlu0 %78, %v49
    %v80 = vpop.permute.xlu0 %79
    %83 = vset.pattern.permute.xlu0 0
    %84 = vperm.xlu0 %83, %v50
    %v85 = vpop.permute.xlu0 %84
    %88 = vset.pattern.permute.xlu0 0
    %89 = vperm.xlu0 %88, %v51
    %v90 = vpop.permute.xlu0 %89
    %93 = vset.pattern.permute.xlu0 0
    %94 = vperm.xlu0 %93, %v52
    %v95 = vpop.permute.xlu0 %94
    %98 = vset.pattern.permute.xlu0 0
    %99 = vperm.xlu0 %98, %v53
    %v100 = vpop.permute.xlu0 %99
    %103 = vset.pattern.permute.xlu0 0
    %104 = vperm.xlu0 %103, %v54
    %v105 = vpop.permute.xlu0 %104
    %108 = vset.pattern.permute.xlu0 0
    %109 = vperm.xlu0 %108, %v55
    %v110 = vpop.permute.xlu0 %109
    %113 = vset.pattern.permute.xlu0 0
    %114 = vperm.xlu0 %113, %v56
    %v115 = vpop.permute.xlu0 %114
    %118 = vset.pattern.permute.xlu0 0
    %119 = vperm.xlu0 %118, %v57
    %v120 = vpop.permute.xlu0 %119
    %123 = vset.pattern.permute.xlu0 0
    %124 = vperm.xlu0 %123, %v58
    %v125 = vpop.permute.xlu0 %124
    %128 = vset.pattern.permute.xlu0 0
    %129 = vperm.xlu0 %128, %v59
    %v130 = vpop.permute.xlu0 %129
    %133 = vset.pattern.permute.xlu0 0
    %134 = vperm.xlu0 %133, %v60
    %v135 = vpop.permute.xlu0 %134
    %138 = vset.pattern.permute.xlu0 0
    %139 = vperm.xlu0 %138, %v61
    %v140 = vpop.permute.xlu0 %139
    %v158 = vunpack.c.l.b16 %v29
    %v159 = vunpack.c.l.b16 %v30
    %v160 = vunpack.c.l.b16 %v31
    %v161 = vunpack.c.l.b16 %v32
    %v162 = vunpack.c.l.b16 %v33
    %v163 = vunpack.c.l.b16 %v34
    %v164 = vunpack.c.l.b16 %v35
    %v165 = vunpack.c.l.b16 %v36
    %v166 = vunpack.c.l.b16 %v37
    %v167 = vunpack.c.l.b16 %v38
    %v168 = vunpack.c.l.b16 %v39
    %v169 = vunpack.c.l.b16 %v40
    %v170 = vunpack.c.l.b16 %v41
    %v171 = vunpack.c.l.b16 %v42
    %v172 = vunpack.c.l.b16 %v43
    %v173 = vunpack.c.l.b16 %v44
    %v174 = vpack.c.b16 %v159, %v158
    %v175 = vpack.c.b16 %v161, %v160
    %v176 = vpack.c.b16 %v163, %v162
    %v177 = vpack.c.b16 %v165, %v164
    %v178 = vpack.c.b16 %v167, %v166
    %v179 = vpack.c.b16 %v169, %v168
    %v180 = vpack.c.b16 %v171, %v170
    %v181 = vpack.c.b16 %v173, %v172
    %vm182 = vcmask 23552
    %v184 = vsel %vm182, %v174, 0
    %v187 = vsel %vm182, %v175, 0
    %v190 = vsel %vm182, %v176, 0
    %v193 = vsel %vm182, %v177, 0
    %v196 = vsel %vm182, %v178, 0
    %v199 = vsel %vm182, %v179, 0
    %v202 = vsel %vm182, %v180, 0
    %v205 = vsel %vm182, %v181, 0
    %vm207 = vcmask 1040384
    %vm208 = vcmask 1041408
    %v209 = vsel %vm207, 4294967295, 65535
    %v210 = vsel %vm208, %v209, 0
    %v212 = vand.u32 %v45, %v210
    %214 = vmatprep.subr.bf16.mxu0 0
    %215 = vmatpush1.bf16.msra.mxu0 0
    %216 = vmatprep.subr.bf16.mxu0 0
    %217 = vmatpush1.bf16.msra.mxu0 0
    %218 = vmatprep.subr.bf16.mxu0 0
    %219 = vmatpush1.bf16.msra.mxu0 0
    %220 = vmatprep.subr.bf16.mxu0 0
    %221 = vmatpush1.bf16.msra.mxu0 0
    %222 = vmatprep.subr.bf16.mxu0 0
    %223 = vmatpush1.bf16.msra.mxu0 0
    %224 = vmatprep.subr.bf16.mxu0 0
    %225 = vmatpush1.bf16.msra.mxu0 0
    %226 = vmatprep.subr.bf16.mxu0 0
    %227 = vmatpush1.bf16.msra.mxu0 0
    %228 = vmatprep.subr.bf16.mxu0 0
    %229 = vmatpush1.bf16.msra.mxu0 %v212
    %230 = vmatprep.subr.bf16.mxu0 0
    %231 = vmatpush2.bf16.msra.mxu0 0
    %232 = vmatprep.subr.bf16.mxu0 0
    %233 = vmatpush2.bf16.msra.mxu0 0
    %234 = vmatprep.subr.bf16.mxu0 0
    %235 = vmatpush2.bf16.msra.mxu0 0
    %236 = vmatprep.subr.bf16.mxu0 0
    %237 = vmatpush2.bf16.msra.mxu0 0
    %238 = vmatprep.subr.bf16.mxu0 0
    %239 = vmatpush2.bf16.msra.mxu0 0
    %240 = vmatprep.subr.bf16.mxu0 0
    %241 = vmatpush2.bf16.msra.mxu0 0
    %242 = vmatprep.subr.bf16.mxu0 0
    %243 = vmatpush2.bf16.msra.mxu0 0
    %244 = vmatprep.subr.bf16.mxu0 0
    %245 = vmatpush2.bf16.msra.mxu0 0
    %246 = vmatprep.mubr.bf16.mxu0 0
    %247 = vmatmul.mubr.bf16.gmra.mxu0 %v184
    %v248 = vpop.f32.mrf.mxu0
    %v249 = vadd.f32 %v65, %v248
    %v250 = vpop.f32.mrf.mxu0
    %v251 = vpop.f32.mrf.mxu0
    %v252 = vadd.f32 %v70, %v251
    %v253 = vpop.f32.mrf.mxu0
    %254 = vmatprep.mubr.bf16.mxu0 0
    %255 = vmatmul.mubr.bf16.gmra.mxu0 %v187
    %v256 = vpop.f32.mrf.mxu0
    %v257 = vadd.f32 %v75, %v256
    %v258 = vpop.f32.mrf.mxu0
    %v259 = vpop.f32.mrf.mxu0
    %v260 = vadd.f32 %v80, %v259
    %v261 = vpop.f32.mrf.mxu0
    %262 = vmatprep.mubr.bf16.mxu0 0
    %263 = vmatmul.mubr.bf16.gmra.mxu0 %v190
    %v264 = vpop.f32.mrf.mxu0
    %v265 = vadd.f32 %v85, %v264
    %v266 = vpop.f32.mrf.mxu0
    %v267 = vpop.f32.mrf.mxu0
    %v268 = vadd.f32 %v90, %v267
    %v269 = vpop.f32.mrf.mxu0
    %270 = vmatprep.mubr.bf16.mxu0 0
    %271 = vmatmul.mubr.bf16.gmra.mxu0 %v193
    %v272 = vpop.f32.mrf.mxu0
    %v273 = vadd.f32 %v95, %v272
    %v274 = vpop.f32.mrf.mxu0
    %v275 = vpop.f32.mrf.mxu0
    %v276 = vadd.f32 %v100, %v275
    %v277 = vpop.f32.mrf.mxu0
    %278 = vmatprep.mubr.bf16.mxu0 0
    %279 = vmatmul.mubr.bf16.gmra.mxu0 %v196
    %v280 = vpop.f32.mrf.mxu0
    %v281 = vadd.f32 %v105, %v280
    %v282 = vpop.f32.mrf.mxu0
    %v283 = vpop.f32.mrf.mxu0
    %v284 = vadd.f32 %v110, %v283
    %v285 = vpop.f32.mrf.mxu0
    %286 = vmatprep.mubr.bf16.mxu0 0
    %287 = vmatmul.mubr.bf16.gmra.mxu0 %v199
    %v288 = vpop.f32.mrf.mxu0
    %v289 = vadd.f32 %v115, %v288
    %v290 = vpop.f32.mrf.mxu0
    %v291 = vpop.f32.mrf.mxu0
    %v292 = vadd.f32 %v120, %v291
    %v293 = vpop.f32.mrf.mxu0
    %294 = vmatprep.mubr.bf16.mxu0 0
    %295 = vmatmul.mubr.bf16.gmra.mxu0 %v202
    %v296 = vpop.f32.mrf.mxu0
    %v297 = vadd.f32 %v125, %v296
    %v298 = vpop.f32.mrf.mxu0
    %v299 = vpop.f32.mrf.mxu0
    %v300 = vadd.f32 %v130, %v299
    %v301 = vpop.f32.mrf.mxu0
    %302 = vmatprep.mubr.bf16.mxu0 0
    %303 = vmatmul.mubr.bf16.gmra.mxu0 %v205
    %v304 = vpop.f32.mrf.mxu0
    %v305 = vadd.f32 %v135, %v304
    %v306 = vpop.f32.mrf.mxu0
    %v307 = vpop.f32.mrf.mxu0
    %v308 = vadd.f32 %v140, %v307
    %v309 = vpop.f32.mrf.mxu0
    %310 = vdwg.mxu0
    %v311 = vmax.f32 %v249, 0.0
    %v312 = vmax.f32 %v252, 0.0
    %v313 = vmax.f32 %v257, 0.0
    %v314 = vmax.f32 %v260, 0.0
    %v315 = vmax.f32 %v265, 0.0
    %v316 = vmax.f32 %v268, 0.0
    %v317 = vmax.f32 %v273, 0.0
    %v318 = vmax.f32 %v276, 0.0
    %v319 = vmax.f32 %v281, 0.0
    %v320 = vmax.f32 %v284, 0.0
    %v321 = vmax.f32 %v289, 0.0
    %v322 = vmax.f32 %v292, 0.0
    %v323 = vmax.f32 %v297, 0.0
    %v324 = vmax.f32 %v300, 0.0
    %v325 = vmax.f32 %v305, 0.0
    %v326 = vmax.f32 %v308, 0.0
    %v327 = vld [vmem:[%s3] sm:$0xf]
    %v328 = vld [vmem:[%s3 + $0x4] sm:$0xf]
    %v329 = vld [vmem:[%s3 + $0x8] sm:$0xf]
    %v330 = vld [vmem:[%s3 + $0xc] sm:$0xf]
    %v331 = vld [vmem:[%s3 + $0x10] sm:$0xf]
    %v332 = vld [vmem:[%s3 + $0x14] sm:$0xf]
    %v333 = vld [vmem:[%s3 + $0x18] sm:$0xf]
    %v334 = vld [vmem:[%s3 + $0x1c] sm:$0xf]
    %v335 = vld [vmem:[%s3 + $0x20] sm:$0xf]
    %v336 = vld [vmem:[%s3 + $0x24] sm:$0xf]
    %v337 = vld [vmem:[%s3 + $0x28] sm:$0xf]
    %v338 = vld [vmem:[%s3 + $0x2c] sm:$0xf]
    %v339 = vld [vmem:[%s3 + $0x30] sm:$0xf]
    %v340 = vld [vmem:[%s3 + $0x34] sm:$0xf]
    %v341 = vld [vmem:[%s3 + $0x38] sm:$0xf]
    %v342 = vld [vmem:[%s3 + $0x3c] sm:$0xf]
    %v343 = vpack.c.bf16 %v312, %v311
    %v344 = vpack.c.bf16 %v314, %v313
    %v345 = vpack.c.bf16 %v316, %v315
    %v346 = vpack.c.bf16 %v318, %v317
    %v347 = vpack.c.bf16 %v320, %v319
    %v348 = vpack.c.bf16 %v322, %v321
    %v349 = vpack.c.bf16 %v324, %v323
    %v350 = vpack.c.bf16 %v326, %v325
    %v351 = vld [vmem:[%s4] sm:$0xff]
    %v352 = vld [vmem:[%s4 + $0x8] sm:$0xff]
    %v353 = vld [vmem:[%s4 + $0x10] sm:$0xff]
    %v354 = vld [vmem:[%s4 + $0x18] sm:$0xff]
    %v355 = vld [vmem:[%s4 + $0x20] sm:$0xff]
    %v356 = vld [vmem:[%s4 + $0x28] sm:$0xff]
    %v357 = vld [vmem:[%s4 + $0x30] sm:$0xff]
    %v358 = vld [vmem:[%s4 + $0x38] sm:$0xff]
    %v359 = vld [vmem:[%s4 + $0x40] sm:$0xff]
    %v360 = vld [vmem:[%s4 + $0x48] sm:$0xff]
    %v361 = vld [vmem:[%s4 + $0x50] sm:$0xff]
    %v362 = vld [vmem:[%s4 + $0x58] sm:$0xff]
    %v363 = vld [vmem:[%s4 + $0x60] sm:$0xff]
    %v364 = vld [vmem:[%s4 + $0x68] sm:$0xff]
    %v365 = vld [vmem:[%s4 + $0x70] sm:$0xff]
    %v366 = vld [vmem:[%s4 + $0x78] sm:$0xff]
    %368 = vset.pattern.permute.xlu0 0
    %369 = vperm.xlu0 %368, %v351
    %v370 = vpop.permute.xlu0 %369
    %373 = vset.pattern.permute.xlu0 0
    %374 = vperm.xlu0 %373, %v352
    %v375 = vpop.permute.xlu0 %374
    %378 = vset.pattern.permute.xlu0 0
    %379 = vperm.xlu0 %378, %v353
    %v380 = vpop.permute.xlu0 %379
    %383 = vset.pattern.permute.xlu0 0
    %384 = vperm.xlu0 %383, %v354
    %v385 = vpop.permute.xlu0 %384
    %388 = vset.pattern.permute.xlu0 0
    %389 = vperm.xlu0 %388, %v355
    %v390 = vpop.permute.xlu0 %389
    %393 = vset.pattern.permute.xlu0 0
    %394 = vperm.xlu0 %393, %v356
    %v395 = vpop.permute.xlu0 %394
    %398 = vset.pattern.permute.xlu0 0
    %399 = vperm.xlu0 %398, %v357
    %v400 = vpop.permute.xlu0 %399
    %403 = vset.pattern.permute.xlu0 0
    %404 = vperm.xlu0 %403, %v358
    %v405 = vpop.permute.xlu0 %404
    %408 = vset.pattern.permute.xlu0 0
    %409 = vperm.xlu0 %408, %v359
    %v410 = vpop.permute.xlu0 %409
    %413 = vset.pattern.permute.xlu0 0
    %414 = vperm.xlu0 %413, %v360
    %v415 = vpop.permute.xlu0 %414
    %418 = vset.pattern.permute.xlu0 0
    %419 = vperm.xlu0 %418, %v361
    %v420 = vpop.permute.xlu0 %419
    %423 = vset.pattern.permute.xlu0 0
    %424 = vperm.xlu0 %423, %v362
    %v425 = vpop.permute.xlu0 %424
    %428 = vset.pattern.permute.xlu0 0
    %429 = vperm.xlu0 %428, %v363
    %v430 = vpop.permute.xlu0 %429
    %433 = vset.pattern.permute.xlu0 0
    %434 = vperm.xlu0 %433, %v364
    %v435 = vpop.permute.xlu0 %434
    %438 = vset.pattern.permute.xlu0 0
    %439 = vperm.xlu0 %438, %v365
    %v440 = vpop.permute.xlu0 %439
    %443 = vset.pattern.permute.xlu0 0
    %444 = vperm.xlu0 %443, %v366
    %v445 = vpop.permute.xlu0 %444
    %v463 = vunpack.c.l.b16 %v327
    %v464 = vunpack.c.l.b16 %v328
    %v465 = vunpack.c.l.b16 %v329
    %v466 = vunpack.c.l.b16 %v330
    %v467 = vunpack.c.l.b16 %v331
    %v468 = vunpack.c.l.b16 %v332
    %v469 = vunpack.c.l.b16 %v333
    %v470 = vunpack.c.l.b16 %v334
    %v471 = vunpack.c.l.b16 %v335
    %v472 = vunpack.c.l.b16 %v336
    %v473 = vunpack.c.l.b16 %v337
    %v474 = vunpack.c.l.b16 %v338
    %v475 = vunpack.c.l.b16 %v339
    %v476 = vunpack.c.l.b16 %v340
    %v477 = vunpack.c.l.b16 %v341
    %v478 = vunpack.c.l.b16 %v342
    %v479 = vpack.c.b16 %v464, %v463
    %v480 = vpack.c.b16 %v466, %v465
    %v481 = vpack.c.b16 %v468, %v467
    %v482 = vpack.c.b16 %v470, %v469
    %v483 = vpack.c.b16 %v472, %v471
    %v484 = vpack.c.b16 %v474, %v473
    %v485 = vpack.c.b16 %v476, %v475
    %v486 = vpack.c.b16 %v478, %v477
    %495 = vmatprep.subr.bf16.mxu0 0
    %496 = vmatpush1.bf16.msra.mxu0 %v350
    %497 = vmatprep.subr.bf16.mxu0 0
    %498 = vmatpush1.bf16.msra.mxu0 %v349
    %499 = vmatprep.subr.bf16.mxu0 0
    %500 = vmatpush1.bf16.msra.mxu0 %v348
    %501 = vmatprep.subr.bf16.mxu0 0
    %502 = vmatpush1.bf16.msra.mxu0 %v347
    %503 = vmatprep.subr.bf16.mxu0 0
    %504 = vmatpush1.bf16.msra.mxu0 %v346
    %505 = vmatprep.subr.bf16.mxu0 0
    %506 = vmatpush1.bf16.msra.mxu0 %v345
    %507 = vmatprep.subr.bf16.mxu0 0
    %508 = vmatpush1.bf16.msra.mxu0 %v344
    %509 = vmatprep.subr.bf16.mxu0 0
    %510 = vmatpush1.bf16.msra.mxu0 %v343
    %511 = vmatprep.subr.bf16.mxu0 0
    %512 = vmatpush2.bf16.msra.mxu0 0
    %513 = vmatprep.subr.bf16.mxu0 0
    %514 = vmatpush2.bf16.msra.mxu0 0
    %515 = vmatprep.subr.bf16.mxu0 0
    %516 = vmatpush2.bf16.msra.mxu0 0
    %517 = vmatprep.subr.bf16.mxu0 0
    %518 = vmatpush2.bf16.msra.mxu0 0
    %519 = vmatprep.subr.bf16.mxu0 0
    %520 = vmatpush2.bf16.msra.mxu0 0
    %521 = vmatprep.subr.bf16.mxu0 0
    %522 = vmatpush2.bf16.msra.mxu0 0
    %523 = vmatprep.subr.bf16.mxu0 0
    %524 = vmatpush2.bf16.msra.mxu0 0
    %525 = vmatprep.subr.bf16.mxu0 0
    %526 = vmatpush2.bf16.msra.mxu0 0
    %527 = vmatprep.mubr.bf16.mxu0 0
    %528 = vmatmul.mubr.bf16.gmra.mxu0 %v479
    %v529 = vpop.f32.mrf.mxu0
    %v530 = vadd.f32 %v370, %v529
    %v531 = vpop.f32.mrf.mxu0
    %v532 = vpop.f32.mrf.mxu0
    %v533 = vadd.f32 %v375, %v532
    %v534 = vpop.f32.mrf.mxu0
    %535 = vmatprep.mubr.bf16.mxu0 0
    %536 = vmatmul.mubr.bf16.gmra.mxu0 %v480
    %v537 = vpop.f32.mrf.mxu0
    %v538 = vadd.f32 %v380, %v537
    %v539 = vpop.f32.mrf.mxu0
    %v540 = vpop.f32.mrf.mxu0
    %v541 = vadd.f32 %v385, %v540
    %v542 = vpop.f32.mrf.mxu0
    %543 = vmatprep.mubr.bf16.mxu0 0
    %544 = vmatmul.mubr.bf16.gmra.mxu0 %v481
    %v545 = vpop.f32.mrf.mxu0
    %v546 = vadd.f32 %v390, %v545
    %v547 = vpop.f32.mrf.mxu0
    %v548 = vpop.f32.mrf.mxu0
    %v549 = vadd.f32 %v395, %v548
    %v550 = vpop.f32.mrf.mxu0
    %551 = vmatprep.mubr.bf16.mxu0 0
    %552 = vmatmul.mubr.bf16.gmra.mxu0 %v482
    %v553 = vpop.f32.mrf.mxu0
    %v554 = vadd.f32 %v400, %v553
    %v555 = vpop.f32.mrf.mxu0
    %v556 = vpop.f32.mrf.mxu0
    %v557 = vadd.f32 %v405, %v556
    %v558 = vpop.f32.mrf.mxu0
    %559 = vmatprep.mubr.bf16.mxu0 0
    %560 = vmatmul.mubr.bf16.gmra.mxu0 %v483
    %v561 = vpop.f32.mrf.mxu0
    %v562 = vadd.f32 %v410, %v561
    %v563 = vpop.f32.mrf.mxu0
    %v564 = vpop.f32.mrf.mxu0
    %v565 = vadd.f32 %v415, %v564
    %v566 = vpop.f32.mrf.mxu0
    %567 = vmatprep.mubr.bf16.mxu0 0
    %568 = vmatmul.mubr.bf16.gmra.mxu0 %v484
    %v569 = vpop.f32.mrf.mxu0
    %v570 = vadd.f32 %v420, %v569
    %v571 = vpop.f32.mrf.mxu0
    %v572 = vpop.f32.mrf.mxu0
    %v573 = vadd.f32 %v425, %v572
    %v574 = vpop.f32.mrf.mxu0
    %575 = vmatprep.mubr.bf16.mxu0 0
    %576 = vmatmul.mubr.bf16.gmra.mxu0 %v485
    %v577 = vpop.f32.mrf.mxu0
    %v578 = vadd.f32 %v430, %v577
    %v579 = vpop.f32.mrf.mxu0
    %v580 = vpop.f32.mrf.mxu0
    %v581 = vadd.f32 %v435, %v580
    %v582 = vpop.f32.mrf.mxu0
    %583 = vmatprep.mubr.bf16.mxu0 0
    %584 = vmatmul.mubr.bf16.gmra.mxu0 %v486
    %v585 = vpop.f32.mrf.mxu0
    %v586 = vadd.f32 %v440, %v585
    %v587 = vpop.f32.mrf.mxu0
    %v588 = vpop.f32.mrf.mxu0
    %v589 = vadd.f32 %v445, %v588
    %v590 = vpop.f32.mrf.mxu0
    %591 = vdwg.mxu0
    %v592 = vmax.f32 %v530, 0.0
    %v593 = vmax.f32 %v533, 0.0
    %v594 = vmax.f32 %v538, 0.0
    %v595 = vmax.f32 %v541, 0.0
    %v596 = vmax.f32 %v546, 0.0
    %v597 = vmax.f32 %v549, 0.0
    %v598 = vmax.f32 %v554, 0.0
    %v599 = vmax.f32 %v557, 0.0
    %v600 = vmax.f32 %v562, 0.0
    %v601 = vmax.f32 %v565, 0.0
    %v602 = vmax.f32 %v570, 0.0
    %v603 = vmax.f32 %v573, 0.0
    %v604 = vmax.f32 %v578, 0.0
    %v605 = vmax.f32 %v581, 0.0
    %v606 = vmax.f32 %v586, 0.0
    %v607 = vmax.f32 %v589, 0.0
    %v608 = vld [vmem:[%s5] sm:$0xf]
    %v609 = vpack.c.bf16 %v593, %v592
    %v610 = vpack.c.bf16 %v595, %v594
    %v611 = vpack.c.bf16 %v597, %v596
    %v612 = vpack.c.bf16 %v599, %v598
    %v613 = vpack.c.bf16 %v601, %v600
    %v614 = vpack.c.bf16 %v603, %v602
    %v615 = vpack.c.bf16 %v605, %v604
    %v616 = vpack.c.bf16 %v607, %v606
    %617 = vmatprep.subr.bf16.mxu0 0
    %618 = vmatpush1.bf16.msra.mxu0 %v616
    %619 = vmatprep.subr.bf16.mxu0 0
    %620 = vmatpush1.bf16.msra.mxu0 %v615
    %621 = vmatprep.subr.bf16.mxu0 0
    %622 = vmatpush1.bf16.msra.mxu0 %v614
    %623 = vmatprep.subr.bf16.mxu0 0
    %624 = vmatpush1.bf16.msra.mxu0 %v613
    %625 = vmatprep.subr.bf16.mxu0 0
    %626 = vmatpush1.bf16.msra.mxu0 %v612
    %627 = vmatprep.subr.bf16.mxu0 0
    %628 = vmatpush1.bf16.msra.mxu0 %v611
    %629 = vmatprep.subr.bf16.mxu0 0
    %630 = vmatpush1.bf16.msra.mxu0 %v610
    %631 = vmatprep.subr.bf16.mxu0 0
    %632 = vmatpush1.bf16.msra.mxu0 %v609
    %633 = vmatprep.subr.bf16.mxu0 0
    %634 = vmatpush2.bf16.msra.mxu0 0
    %635 = vmatprep.subr.bf16.mxu0 0
    %636 = vmatpush2.bf16.msra.mxu0 0
    %637 = vmatprep.subr.bf16.mxu0 0
    %638 = vmatpush2.bf16.msra.mxu0 0
    %639 = vmatprep.subr.bf16.mxu0 0
    %640 = vmatpush2.bf16.msra.mxu0 0
    %641 = vmatprep.subr.bf16.mxu0 0
    %642 = vmatpush2.bf16.msra.mxu0 0
    %643 = vmatprep.subr.bf16.mxu0 0
    %644 = vmatpush2.bf16.msra.mxu0 0
    %645 = vmatprep.subr.bf16.mxu0 0
    %646 = vmatpush2.bf16.msra.mxu0 0
    %647 = vmatprep.subr.bf16.mxu0 0
    %648 = vmatpush2.bf16.msra.mxu0 0
    %649 = vmatprep.mubr.bf16.mxu0 0
    %650 = vmatmul.mubr.bf16.gmra.mxu0 %v608
    %v651 = vpop.f32.mrf.mxu0
    %v652 = vadd.f32 0.0, %v651
    %v653 = vpop.f32.mrf.mxu0
    %v654 = vpop.f32.mrf.mxu0
    %v655 = vpop.f32.mrf.mxu0
    %656 = vdwg.mxu0
    %s657 = sld [smem:[#allocation2]]
    %v658 = vstv %s657
    %v659 = vadd.f32 %v652, %v658
    %v660 = vtanh.pop %v659
    %v661 = vmul.f32 %v660, 2.0
    %662 = vst [vmem:[#allocation3] sm:$0x1] %v661
    // Predicated region
    $region30: #{tpu_custom_call.1} parent=1 // pred_check
      _
    $region31: #{tpu_custom_call.1} parent=1 // pred_check_branch
      %664 = sbr.rel (0) target = $region33
    $region32: #{tpu_custom_call.1} parent=1 // pred_region
      %s666 = ssub.s32 16, 16
      %667 = vsyncadd [#allocation4], %s666
      %s669 = sshll.u32 [#allocation3], 4
      %s670 = int_to_ptr.vmem [resolvable:$true] %s669
      %672 = dma.vmem_to_hbm [thread:$0]  %s670, 16, %s7, [#allocation4]
    $region33: #{tpu_custom_call.1} parent=1 // pred_fallthru
      _
    // Predicated region
    $region34: #{tpu_custom_call.1} parent=1 // pred_check
      _
    $region35: #{tpu_custom_call.1} parent=1 // pred_check_branch
      %674 = sbr.rel (0) target = $region37
    $region36: #{tpu_custom_call.1} parent=1 // pred_region
      %675 = dma.done [#allocation4], 16
    $region37: #{tpu_custom_call.1} parent=1 // pred_fallthru
      _
    %676 = vsyncpa [#allocation4], 1

</llo_original>
